<compile_context>
chip_gen: v6e
topology: v6e:2x2x1
jax: 0.10.0
libtpu: 0.0.40
codegen_flags: <defaults>
</compile_context>

<pallas_src>
import jax
import jax.numpy as jnp
from jax.experimental import pallas as pl
from jax.experimental.pallas import tpu as pltpu


def _round_up(x, m):
    return (x + m - 1) // m * m


def _vmem_budget_bytes():
    """~0.75 x physical VMEM per TensorCore (96 MiB on v5e/v6e, 48 MiB on v7x)."""
    cap = 64 * 1024 * 1024
    try:
        info = pltpu.get_tpu_info()
        cap = int(getattr(info, "vmem_capacity_bytes", cap))
    except Exception:
        pass
    return int(0.75 * cap)


def _quantize_int8_per_col(w):
    """Symmetric per-column int8 quantization.  Returns (int8 weights, f32 scales)."""
    amax = jnp.max(jnp.abs(w), axis=0, keepdims=True)
    scale = jnp.maximum(amax, 1e-30) / 127.0
    q = jnp.clip(jnp.round(w / scale), -127.0, 127.0).astype(jnp.int8)
    return q, scale.astype(jnp.float32)


# ------------- Stage 1: hidden = tanh(x @ Hw + (Hb + d)) --------------------
def _hidden_kernel(x_ref, hw_ref, hb_ref, h_ref):
    pre = jnp.dot(x_ref[...], hw_ref[...],
                  preferred_element_type=jnp.float32) + hb_ref[...]
    h_ref[...] = jnp.tanh(pre).astype(h_ref.dtype)


# ------------- Stage 2: out_tile = h @ Uq_tile * su + x @ Wq_tile * sw + bias
def _output_kernel(h_ref, x_ref, uw_ref, ww_ref, sb_ref, o_ref):
    tn_blk = o_ref.shape[1]
    start = pl.multiple_of(pl.program_id(0) * tn_blk, 128)
    # int8 weight tiles dequantized to bf16 in VMEM; MXU runs bf16 x bf16 -> f32.
    acc_u = jnp.dot(h_ref[...], uw_ref[...].astype(jnp.bfloat16),
                    preferred_element_type=jnp.float32)
    acc_w = jnp.dot(x_ref[...], ww_ref[...].astype(jnp.bfloat16),
                    preferred_element_type=jnp.float32)
    sb = sb_ref[:, pl.ds(start, tn_blk)]        # (3, tn): [u_scale; w_scale; bias]
    out = acc_u * sb[0:1, :] + acc_w * sb[1:2, :] + sb[2:3, :]
    o_ref[...] = out.astype(o_ref.dtype)


def prepare_params(params, *, max_batch=16, tn=None, vmem_budget_bytes=None):
    """One-time (weight-load time) preparation: padding, int8 quantization, bias
    fusion, vocab-tile sizing.  Nothing here runs per forward call."""
    C, Hw, Hb, d, Uw, Ub, Ww, Wb, b = params
    n_in, hidden = Hw.shape
    vocab = Uw.shape[1]

    # K dims padded to a multiple of 32 (int8 sublane quantum; also covers bf16=16).
    n_in_pad = _round_up(n_in, 32)
    hidden_pad = _round_up(hidden, 32)
    b_pad_max = _round_up(max_batch, 16)          # bf16 packs 16 rows / sublane group

    # ---- vocab tile width from the per-generation VMEM budget ----------------
    budget = vmem_budget_bytes or _vmem_budget_bytes()
    vocab128 = _round_up(vocab, 128)
    resident = (b_pad_max * (hidden_pad + n_in_pad) * 2      # h + x, bf16
                + 8 * vocab128 * 4)                          # scale/bias (sublane pad)
    headroom = 2 * 1024 * 1024                               # compiler scratch etc.
    per_col = 2 * (hidden_pad + n_in_pad + 4 * b_pad_max)    # dbl-buffered wgt + out
    if tn is None:
        tn = max(128, (budget - resident - headroom) // per_col // 128 * 128)
    tn = max(128, min(_round_up(tn, 128), vocab128))
    vocab_pad = _round_up(vocab, tn)

    # ---- hidden layer params --------------------------------------------------
    Hw_bf = jnp.pad(Hw, ((0, n_in_pad - n_in), (0, hidden_pad - hidden))
                    ).astype(jnp.bfloat16)
    hbias = jnp.pad((Hb + d).reshape(1, hidden).astype(jnp.float32),
                    ((0, 0), (0, hidden_pad - hidden)))

    # ---- output layer params: pad, int8-quantize, fuse bias -------------------
    Uw_p = jnp.pad(Uw, ((0, hidden_pad - hidden), (0, vocab_pad - vocab)))
    Ww_p = jnp.pad(Ww, ((0, n_in_pad - n_in), (0, vocab_pad - vocab)))
    uw_q, u_scale = _quantize_int8_per_col(Uw_p)
    ww_q, w_scale = _quantize_int8_per_col(Ww_p)
    bias = jnp.pad((Ub + Wb + b).reshape(1, vocab).astype(jnp.float32),
                   ((0, 0), (0, vocab_pad - vocab)))
    scale_bias = jnp.concatenate([u_scale, w_scale, bias], axis=0)  # (3, vocab_pad)

    return dict(
        C=C, Hw_bf=Hw_bf, hbias=hbias, uw_q=uw_q, ww_q=ww_q, scale_bias=scale_bias,
        n_in=n_in, n_in_pad=n_in_pad, hidden=hidden, hidden_pad=hidden_pad,
        vocab=vocab, vocab_pad=vocab_pad, tn=int(tn), b_pad_max=b_pad_max,
        vmem_limit=int(budget),
    )


def nnlm_forward(x_ids, prep):
    """x_ids: (B, n_pred) int32 token indices; prep: output of prepare_params."""
    B = x_ids.shape[0]
    n_in, n_in_pad = prep["n_in"], prep["n_in_pad"]
    hidden_pad = prep["hidden_pad"]
    vocab, vocab_pad, tn = prep["vocab"], prep["vocab_pad"], prep["tn"]
    b_pad = _round_up(B, 16)
    assert b_pad <= prep["b_pad_max"], "increase max_batch in prepare_params"

    # --- glue: embedding gather + flatten (== self.C(x).view(B, -1)) ----------
    x_flat = jnp.take(prep["C"], x_ids, axis=0).reshape(B, n_in)
    x_bf = jnp.pad(x_flat, ((0, b_pad - B), (0, n_in_pad - n_in))
                   ).astype(jnp.bfloat16)

    # --- stage 1: tiny single-block kernel for the hidden layer ---------------
    h = pl.pallas_call(
        _hidden_kernel,
        out_shape=jax.ShapeDtypeStruct((b_pad, hidden_pad), jnp.bfloat16),
    )(x_bf, prep["Hw_bf"], prep["hbias"])

    # --- stage 2: stream int8 weight tiles over the vocab dimension -----------
    nh = hidden_pad + n_in_pad
    grid = (vocab_pad // tn,)
    out_pad = pl.pallas_call(
        _output_kernel,
        out_shape=jax.ShapeDtypeStruct((b_pad, vocab_pad), jnp.float32),
        grid=grid,
        in_specs=[
            pl.BlockSpec((b_pad, hidden_pad), lambda j: (0, 0)),   # h: resident
            pl.BlockSpec((b_pad, n_in_pad), lambda j: (0, 0)),     # x: resident
            pl.BlockSpec((hidden_pad, tn), lambda j: (0, j)),      # int8 U tile
            pl.BlockSpec((n_in_pad, tn), lambda j: (0, j)),        # int8 W tile
            pl.BlockSpec((3, vocab_pad), lambda j: (0, 0)),        # scales+bias: resident
        ],
        out_specs=pl.BlockSpec((b_pad, tn), lambda j: (0, j)),
        compiler_params=pltpu.CompilerParams(
            dimension_semantics=("parallel",),
            vmem_limit_bytes=prep["vmem_limit"]),
        cost_estimate=pl.CostEstimate(
            flops=2 * b_pad * nh * vocab_pad,
            transcendentals=0,
            bytes_accessed=nh * vocab_pad            # int8 weights
                           + 3 * vocab_pad * 4       # scales + bias
                           + b_pad * nh * 2          # resident LHS
                           + b_pad * vocab_pad * 4), # f32 logits
    )(h, x_bf, prep["uw_q"], prep["ww_q"], prep["scale_bias"])

    if vocab_pad == vocab and b_pad == B:
        return out_pad
    return out_pad[:B, :vocab]


def init_params(key, vocab_size, embed_size, hidden, n_pred):
    n_in = n_pred * embed_size
    ks = jax.random.split(key, 6)
    C = jax.random.normal(ks[0], (vocab_size, embed_size), jnp.float32) * 0.1
    # Linear weights stored pre-transposed: (in_features, out_features).
    Hw = jax.random.normal(ks[1], (n_in, hidden), jnp.float32) * 0.1
    Hb = jax.random.normal(ks[2], (1, hidden), jnp.float32) * 0.1
    d = jnp.ones((1, hidden), jnp.float32)            # nn.Parameter(torch.ones(hidden))
    Uw = jax.random.normal(ks[3], (hidden, vocab_size), jnp.float32) * 0.1
    Ub = jax.random.normal(ks[4], (1, vocab_size), jnp.float32) * 0.1
    Ww = jax.random.normal(ks[5], (n_in, vocab_size), jnp.float32) * 0.1
    Wb = jnp.zeros((1, vocab_size), jnp.float32)
    b = jnp.ones((1, vocab_size), jnp.float32)        # nn.Parameter(torch.ones(vocab))
    return (C, Hw, Hb, d, Uw, Ub, Ww, Wb, b)


def nnlm_reference(x_ids, params):
    """Pure-JAX f32 reference of the PyTorch forward."""
    C, Hw, Hb, d, Uw, Ub, Ww, Wb, b = params
    B = x_ids.shape[0]
    x = jnp.take(C, x_ids, axis=0).reshape(B, -1)
    h = jnp.tanh(x @ Hw + Hb + d)
    return h @ Uw + Ub + x @ Ww + Wb + b


def nnlm_reference_quantized(x_ids, params, prep):
    """Reference using the same dequantized int8 weights the kernel streams."""
    C, Hw, Hb, d, Uw, Ub, Ww, Wb, b = params
    H, V = Uw.shape
    NI = Ww.shape[0]
    uw_deq = prep["uw_q"].astype(jnp.float32)[:H, :V] * prep["scale_bias"][0:1, :V]
    ww_deq = prep["ww_q"].astype(jnp.float32)[:NI, :V] * prep["scale_bias"][1:2, :V]
    hw = prep["Hw_bf"].astype(jnp.float32)[:NI, :H]
    B = x_ids.shape[0]
    x = jnp.take(C, x_ids, axis=0).reshape(B, -1)
    h = jnp.tanh(x @ hw + Hb + d)
    return h @ uw_deq + x @ ww_deq + (Ub + Wb + b)


if __name__ == "__main__":
    vocab_size, embed_size, hidden, n_pred, batch = 256, 16, 32, 8, 8

    key = jax.random.PRNGKey(0)
    k_param, k_ids = jax.random.split(key)
    params = init_params(k_param, vocab_size, embed_size, hidden, n_pred)
    x_ids = jax.random.randint(k_ids, (batch, n_pred), 0, vocab_size, jnp.int32)

    # One-time weight prep.  tn=128 forces a 2-step vocab grid so the streaming /
    # pipelined path is exercised even at this tiny vocab (normally tn is derived
    # from the VMEM budget and would cover the whole vocab here).
    prep = prepare_params(params, max_batch=batch, tn=128)

    out = jax.block_until_ready(nnlm_forward(x_ids, prep))
    assert out.shape == (batch, vocab_size)

    # Tight check vs. a reference that uses the kernel's own dequantized weights
    # (remaining diff is bf16 rounding of the activations).
    ref_q = nnlm_reference_quantized(x_ids, params, prep)
    assert jnp.allclose(out, ref_q, atol=1e-2, rtol=1e-2)

    # Sanity vs. full-f32 reference (difference is int8 weight quantization).
    ref_f32 = nnlm_reference(x_ids, params)
    assert jnp.allclose(out, ref_f32, atol=5e-2, rtol=5e-2)

    print("KERNEL_OK")
</pallas_src>

<mosaic_0001>
module attributes {stable_mosaic.version = 11 : i64} {
  func.func @_hidden_kernel(%arg0: memref<16x128xbf16, #tpu.memory_space<vmem>>, %arg1: memref<128x32xbf16, #tpu.memory_space<vmem>>, %arg2: memref<1x32xf32, #tpu.memory_space<vmem>>, %arg3: memref<16x32xbf16, #tpu.memory_space<vmem>>) attributes {dimension_semantics = [], scalar_prefetch = 0 : i64, scratch_operands = 0 : i64, tpu.core_type = #tpu.core_type<tc>} {
    %c0 = arith.constant 0 : index
    %c0_0 = arith.constant 0 : index
    %0 = vector.load %arg0[%c0, %c0_0] : memref<16x128xbf16, #tpu.memory_space<vmem>>, vector<16x128xbf16>
    %c0_1 = arith.constant 0 : index
    %c0_2 = arith.constant 0 : index
    %1 = vector.load %arg1[%c0_1, %c0_2] : memref<128x32xbf16, #tpu.memory_space<vmem>>, vector<128x32xbf16>
    %cst = arith.constant dense<0.000000e+00> : vector<16x32xf32>
    %2 = tpu.matmul %0, %1, %cst {dimension_numbers = #tpu.dot_dimension_numbers<[1], [0], [0], [1], [0, 0, 1, 1], [], []>} : vector<16x128xbf16>, vector<128x32xbf16>, vector<16x32xf32> -> vector<16x32xf32>
    %c0_3 = arith.constant 0 : index
    %c0_4 = arith.constant 0 : index
    %3 = vector.load %arg2[%c0_3, %c0_4] : memref<1x32xf32, #tpu.memory_space<vmem>>, vector<1x32xf32>
    %4 = vector.broadcast %3 : vector<1x32xf32> to vector<16x32xf32>
    %5 = arith.addf %2, %4 : vector<16x32xf32>
    %6 = math.tanh %5 : vector<16x32xf32>
    %7 = arith.truncf %6 : vector<16x32xf32> to vector<16x32xbf16>
    %c0_5 = arith.constant 0 : index
    %c0_6 = arith.constant 0 : index
    %8 = vector.load %arg3[%c0_5, %c0_6] : memref<16x32xbf16, #tpu.memory_space<vmem>>, vector<16x32xbf16>
    tpu.vector_store %arg3[%c0_5, %c0_6], %7 {strides = array<i32>} : memref<16x32xbf16, #tpu.memory_space<vmem>>, vector<16x32xbf16>,
    return
  }
}

</mosaic_0001>

<llo_original>
// kernel: tpu_custom_call.1
$region0: #{tpu_custom_call.1}
  #allocation0 [shape = 'u32[]', space=smem, size = 0x4, offset = 0x4, fixed_abs, tag = 'smem constant byte address 0x4 - core index']
  #allocation1 [shape = 'u32[144,128]{1,0:T(1,128)}', space=vmem, size = 0x12000, scoped, tag = 'internal scratch']
  %s0 = inlined_call_operand.vmem [shape: bf16[16,128], index: 0, kind: input, shape index: {}]
  %s1 = inlined_call_operand.vmem [shape: bf16[128,32], index: 1, kind: input, shape index: {}]
  %s2 = inlined_call_operand.vmem [shape: f32[1,32], index: 2, kind: input, shape index: {}]
  %s3 = inlined_call_operand.hbm [shape: bf16[16,32], index: 3, kind: output, shape index: {}]
  %s4 = sld [smem:[#allocation0]]
  $region22: #{tpu_custom_call.1} parent=0
    _
  %s6 = ssub.s32 1, %s4
  %s7 = scalar_select 0, %s6, %s4
  $region1: #{tpu_custom_call.1} parent=0
    #allocation2 [shape = 'u8[4096]{0}', space=vmem, size = 0x1000, scoped, tag = 'output window, operand 0, single buffered']
    #allocation3 [shape = 's32[1]{0}', space=sflag, size = 0x4, scoped, tag = 'scoped memory for tpu_custom_call.1']
    %8 = vsyncpa [#allocation3], 0
    // Predicated region
    $region2: #{tpu_custom_call.1} parent=1 // pred_check
      _
    $region3: #{tpu_custom_call.1} parent=1 // pred_check_branch
      %10 = sbr.rel (0) target = $region5
    $region4: #{tpu_custom_call.1} parent=1 // pred_region
      _
    $region5: #{tpu_custom_call.1} parent=1 // pred_fallthru
      _
    // Predicated region
    $region6: #{tpu_custom_call.1} parent=1 // pred_check
      _
    $region7: #{tpu_custom_call.1} parent=1 // pred_check_branch
      %12 = sbr.rel (0) target = $region9
    $region8: #{tpu_custom_call.1} parent=1 // pred_region
      _
    $region9: #{tpu_custom_call.1} parent=1 // pred_fallthru
      _
    // Predicated region
    $region10: #{tpu_custom_call.1} parent=1 // pred_check
      _
    $region11: #{tpu_custom_call.1} parent=1 // pred_check_branch
      %14 = sbr.rel (0) target = $region13
    $region12: #{tpu_custom_call.1} parent=1 // pred_region
      _
    $region13: #{tpu_custom_call.1} parent=1 // pred_fallthru
      _
    %v16 = vld [vmem:[%s0] sm:$0xf]
    %v17 = vld [vmem:[%s0 + $0x4] sm:$0xf]
    %v18 = vld [vmem:[%s1] sm:$0xf]
    %v19 = vld [vmem:[%s1 + $0x4] sm:$0xf]
    %v20 = vld [vmem:[%s1 + $0x8] sm:$0xf]
    %v21 = vld [vmem:[%s1 + $0xc] sm:$0xf]
    %v22 = vld [vmem:[%s1 + $0x10] sm:$0xf]
    %v23 = vld [vmem:[%s1 + $0x14] sm:$0xf]
    %v24 = vld [vmem:[%s1 + $0x18] sm:$0xf]
    %v25 = vld [vmem:[%s1 + $0x1c] sm:$0xf]
    %v26 = vld [vmem:[%s1 + $0x20] sm:$0xf]
    %v27 = vld [vmem:[%s1 + $0x24] sm:$0xf]
    %v28 = vld [vmem:[%s1 + $0x28] sm:$0xf]
    %v29 = vld [vmem:[%s1 + $0x2c] sm:$0xf]
    %v30 = vld [vmem:[%s1 + $0x30] sm:$0xf]
    %v31 = vld [vmem:[%s1 + $0x34] sm:$0xf]
    %v32 = vld [vmem:[%s1 + $0x38] sm:$0xf]
    %v33 = vld [vmem:[%s1 + $0x3c] sm:$0xf]
    %v34 = vld [vmem:[%s2] sm:$0x1]
    %v36 = vlaneseq
    %v37 = vshrl.u32 %v36, 7
    %v38 = vsub.s32 0, %v37
    %v39 = vrot.slane %v34, %v38
    %v43 = vunpack.c.l.b16 %v16
    %v44 = vunpack.c.l.b16 %v17
    %v45 = vpack.c.b16 %v44, %v43
    %v63 = vunpack.c.l.b16 %v18
    %v64 = vunpack.c.l.b16 %v19
    %v65 = vunpack.c.l.b16 %v20
    %v66 = vunpack.c.l.b16 %v21
    %v67 = vunpack.c.l.b16 %v22
    %v68 = vunpack.c.l.b16 %v23
    %v69 = vunpack.c.l.b16 %v24
    %v70 = vunpack.c.l.b16 %v25
    %v71 = vunpack.c.l.b16 %v26
    %v72 = vunpack.c.l.b16 %v27
    %v73 = vunpack.c.l.b16 %v28
    %v74 = vunpack.c.l.b16 %v29
    %v75 = vunpack.c.l.b16 %v30
    %v76 = vunpack.c.l.b16 %v31
    %v77 = vunpack.c.l.b16 %v32
    %v78 = vunpack.c.l.b16 %v33
    %v79 = vpack.c.b16 %v64, %v63
    %v80 = vpack.c.b16 %v66, %v65
    %v81 = vpack.c.b16 %v68, %v67
    %v82 = vpack.c.b16 %v70, %v69
    %v83 = vpack.c.b16 %v72, %v71
    %v84 = vpack.c.b16 %v74, %v73
    %v85 = vpack.c.b16 %v76, %v75
    %v86 = vpack.c.b16 %v78, %v77
    %95 = vmatprep.subr.bf16.mxu0 0
    %96 = vmatpush1.bf16.msra.mxu0 %v86
    %97 = vmatprep.subr.bf16.mxu0 0
    %98 = vmatpush1.bf16.msra.mxu0 %v85
    %99 = vmatprep.subr.bf16.mxu0 0
    %100 = vmatpush1.bf16.msra.mxu0 %v84
    %101 = vmatprep.subr.bf16.mxu0 0
    %102 = vmatpush1.bf16.msra.mxu0 %v83
    %103 = vmatprep.subr.bf16.mxu0 0
    %104 = vmatpush1.bf16.msra.mxu0 %v82
    %105 = vmatprep.subr.bf16.mxu0 0
    %106 = vmatpush1.bf16.msra.mxu0 %v81
    %107 = vmatprep.subr.bf16.mxu0 0
    %108 = vmatpush1.bf16.msra.mxu0 %v80
    %109 = vmatprep.subr.bf16.mxu0 0
    %110 = vmatpush1.bf16.msra.mxu0 %v79
    %111 = vmatprep.subr.bf16.mxu0 0
    %112 = vmatpush2.bf16.msra.mxu0 0
    %113 = vmatprep.subr.bf16.mxu0 0
    %114 = vmatpush2.bf16.msra.mxu0 0
    %115 = vmatprep.subr.bf16.mxu0 0
    %116 = vmatpush2.bf16.msra.mxu0 0
    %117 = vmatprep.subr.bf16.mxu0 0
    %118 = vmatpush2.bf16.msra.mxu0 0
    %119 = vmatprep.subr.bf16.mxu0 0
    %120 = vmatpush2.bf16.msra.mxu0 0
    %121 = vmatprep.subr.bf16.mxu0 0
    %122 = vmatpush2.bf16.msra.mxu0 0
    %123 = vmatprep.subr.bf16.mxu0 0
    %124 = vmatpush2.bf16.msra.mxu0 0
    %125 = vmatprep.subr.bf16.mxu0 0
    %126 = vmatpush2.bf16.msra.mxu0 0
    %127 = vmatprep.mubr.bf16.mxu0 0
    %128 = vmatmul.mubr.bf16.gmra.mxu0 %v45
    %v129 = vpop.f32.mrf.mxu0
    %v130 = vadd.f32 %v39, %v129
    %v131 = vpop.f32.mrf.mxu0
    %v132 = vpop.f32.mrf.mxu0
    %v133 = vadd.f32 %v39, %v132
    %v134 = vpop.f32.mrf.mxu0
    %135 = vdwg.mxu0
    %v136 = vtanh.pop %v130
    %v137 = vtanh.pop %v133
    %v138 = vpack.c.bf16 %v137, %v136
    %v140 = vunpack.c.l.b16 %v138
    %v141 = vunpack.c.h.b16 %v138
    %v142 = vpack.c.b16 %v140, %v140
    %v143 = vpack.c.b16 %v141, %v141
    %vm146 = vcmask 257024
    %147 = vst.msk [vmem:[#allocation2] sm:$0xf] %vm146, %v142
    %148 = vst.msk [vmem:[#allocation2 + $0x4] sm:$0xf] %vm146, %v143
    // Predicated region
    $region14: #{tpu_custom_call.1} parent=1 // pred_check
      _
    $region15: #{tpu_custom_call.1} parent=1 // pred_check_branch
      %150 = sbr.rel (0) target = $region17
    $region16: #{tpu_custom_call.1} parent=1 // pred_region
      %s152 = ssub.s32 128, 128
      %153 = vsyncadd [#allocation3], %s152
      %s154 = sshll.u32 [#allocation2], 4
      %s155 = int_to_ptr.vmem [resolvable:$true] %s154
      %160 = dma.vmem_to_hbm [thread:$0]  %s155, 128, %s3, [#allocation3], 64, 64, 4
    $region17: #{tpu_custom_call.1} parent=1 // pred_fallthru
      _
    // Predicated region
    $region18: #{tpu_custom_call.1} parent=1 // pred_check
      _
    $region19: #{tpu_custom_call.1} parent=1 // pred_check_branch
      %162 = sbr.rel (0) target = $region21
    $region20: #{tpu_custom_call.1} parent=1 // pred_region
      %163 = dma.done [#allocation3], 128
    $region21: #{tpu_custom_call.1} parent=1 // pred_fallthru
      _
    %164 = vsyncpa [#allocation3], 1

</llo_original>
